<compile_context>
chip_gen: v5e
topology: v5e:2x2
jax: 0.10.0
libtpu: 0.0.40
codegen_flags: <defaults>
</compile_context>

<pallas_src>
import jax
import jax.numpy as jnp
from jax.experimental import pallas as pl
from jax.experimental.pallas import tpu as pltpu


def _task_block_kernel(x_ref, w1_ref, b1_ref, w2_ref, b2_ref, o_ref):
    """One grid step == one (task block, batch block) tile.

    x_ref  : (b_blk, F)         compute-dtype input block
    w1_ref : (F, t_blk*H)       packed first-layer weights (hidden-major per block)
    b1_ref : (1, t_blk*H)       packed first-layer biases (f32)
    w2_ref : (1, t_blk*H)       packed second-layer weights (f32, true size)
    b2_ref : (1, t_blk)         second-layer biases (f32)
    o_ref  : (b_blk, t_blk)     this tile of the (B, T) output
    """
    t_blk = o_ref.shape[-1]
    hidden = w1_ref.shape[-1] // t_blk

    # first layer for the whole task block: one lane-dense MXU matmul (f32 acc)
    h = jnp.dot(x_ref[...], w1_ref[...], preferred_element_type=jnp.float32)
    h = jnp.maximum(h + b1_ref[...], 0.0)                 # (b_blk, t_blk*H) f32

    # second layer (out_features = 1 per task): VPU multiply by the true-size
    # f32 w2 row, then reduce each task's H hidden values.  With hidden-major
    # packing, hidden index j of every task in the block occupies the
    # contiguous lane window [j*t_blk, (j+1)*t_blk), so the reduction is a sum
    # of H static lane slices (vreg-aligned whenever t_blk % 128 == 0).
    hw = h * w2_ref[...]
    parts = [hw[:, j * t_blk:(j + 1) * t_blk] for j in range(hidden)]
    while len(parts) > 1:                                  # balanced tree sum
        nxt = [parts[i] + parts[i + 1] for i in range(0, len(parts) - 1, 2)]
        if len(parts) % 2:
            nxt.append(parts[-1])
        parts = nxt

    o_ref[...] = (parts[0] + b2_ref[...]).astype(o_ref.dtype)


def _pick_batch_block(batch, max_block=256):
    """Batch rows per grid step (multiple of 8, or the full extent)."""
    if batch <= max_block:
        return batch
    for cand in (256, 128, 512, 384, 192, 64):
        if batch % cand == 0:
            return cand
    return batch  # awkward batch sizes stay monolithic (full extent -> legal)


def _pick_task_block(num_tasks, in_features, hidden, b_blk, itemsize,
                     target_w1_bytes, vmem_budget_bytes):
    """Tasks per grid step.

    Returns (t_blk, padded_num_tasks, est_step_bytes).  t_blk is either the
    full task extent (always legal) or a multiple of 128 (task axis padded),
    and is sized so that everything resident per step — W1 block, f32 b1/w2
    rows, f32 h/hw intermediates, x and out blocks, all double-buffered —
    stays within the VMEM budget while the W1 block tracks the per-generation
    target size.
    """
    def step_bytes(tb):
        return (2 * in_features * tb * hidden * itemsize   # W1 block (x2 buffers)
                + 2 * 2 * tb * hidden * 4                  # b1 + w2 rows (f32, x2)
                + 2 * tb * 4 + 2 * b_blk * tb * 4          # b2 + out block (x2)
                + 2 * b_blk * in_features * itemsize       # x block (x2)
                + 2 * b_blk * tb * hidden * 4)             # f32 h / hw intermediates

    w1_total = in_features * num_tasks * hidden * itemsize
    if num_tasks < 128 or (step_bytes(num_tasks) <= vmem_budget_bytes
                           and w1_total <= 2 * target_w1_bytes):
        # single task block: every BlockSpec dim equals the full extent
        return num_tasks, num_tasks, step_bytes(num_tasks)

    per_task_w1 = max(1, in_features * hidden * itemsize)
    t_blk = max(128, (int(target_w1_bytes // per_task_w1) // 128) * 128)
    while t_blk > 128 and step_bytes(t_blk) > vmem_budget_bytes:
        t_blk -= 128
    t_blk = min(t_blk, ((num_tasks + 127) // 128) * 128)
    t_pad = ((num_tasks + t_blk - 1) // t_blk) * t_blk
    return t_blk, t_pad, step_bytes(t_blk)


def task_specific_prediction(x, w1, b1, w2, b2, *, compute_dtype=jnp.bfloat16):
    """x: (B, F); w1: (T, F, H); b1: (T, H); w2: (T, H); b2: (T,) -> (B, T) f32.

    compute_dtype controls the streamed x / W1 dtype (bf16 default, f32 for
    exact parity at 2x the HBM weight traffic).  Biases, w2 and all
    accumulation stay in f32.
    """
    B, F = x.shape
    T, F2, H = w1.shape
    assert F2 == F, (F2, F)
    itemsize = jnp.dtype(compute_dtype).itemsize

    # ---- generation-aware VMEM accounting (v7x has only 64 MiB physical) ----
    try:
        vmem_cap = int(pltpu.get_tpu_info().vmem_capacity_bytes)
    except Exception:
        vmem_cap = 128 * 1024 * 1024
    base_limit = min(64 * 1024 * 1024, vmem_cap // 2)      # 64 MiB v5e/v6e, 32 MiB v7x
    target_w1 = (8 * 1024 * 1024 if vmem_cap > 64 * 1024 * 1024
                 else 4 * 1024 * 1024)                      # per-step W1 block target
    vmem_budget = (base_limit * 3) // 4

    b_blk = _pick_batch_block(B)
    n_b = B // b_blk
    t_blk, T_pad, est_step = _pick_task_block(T, F, H, b_blk, itemsize,
                                              target_w1, vmem_budget)
    n_t = T_pad // t_blk

    # ---- pad the task axis so 128-multiple blocks tile it exactly ----------
    # (zero weights/biases -> padded tasks produce exactly 0 and are sliced off)
    if T_pad != T:
        pad = T_pad - T
        w1 = jnp.pad(w1, ((0, pad), (0, 0), (0, 0)))
        b1 = jnp.pad(b1, ((0, pad), (0, 0)))
        w2 = jnp.pad(w2, ((0, pad), (0, 0)))
        b2 = jnp.pad(b2, ((0, pad),))

    # ---- wrapper-side packing (layout plumbing only) -----------------------
    # Hidden-major packing within each task block:
    #   packed column  tb*t_blk*H + j*t_blk + t  holds  W1[tb*t_blk + t, :, j]
    # so the kernel's per-task reduction is a sum of contiguous lane slices.
    w1_packed = (w1.reshape(n_t, t_blk, F, H)
                   .transpose(2, 0, 3, 1)
                   .reshape(F, T_pad * H)
                   .astype(compute_dtype))
    b1_packed = (b1.reshape(n_t, t_blk, H).transpose(0, 2, 1)
                   .reshape(1, T_pad * H).astype(jnp.float32))
    w2_packed = (w2.reshape(n_t, t_blk, H).transpose(0, 2, 1)
                   .reshape(1, T_pad * H).astype(jnp.float32))
    b2_row = b2.reshape(1, T_pad).astype(jnp.float32)
    x_c = x.astype(compute_dtype)

    # best-effort headroom if the fallback single block exceeded the budget
    vmem_limit = int(min(vmem_cap * 7 // 8, max(base_limit, est_step * 5 // 4)))

    cost = pl.CostEstimate(
        flops=int(2 * B * T_pad * H * F + 4 * B * T_pad * H),
        transcendentals=0,
        bytes_accessed=int(F * T_pad * H * itemsize        # W1 stream (once)
                           + n_t * B * F * itemsize        # x per task block
                           + 2 * T_pad * H * 4             # b1 + w2 rows
                           + T_pad * 4                     # b2
                           + B * T_pad * 4))               # out

    out = pl.pallas_call(
        _task_block_kernel,
        out_shape=jax.ShapeDtypeStruct((B, T_pad), jnp.float32),
        grid_spec=pltpu.PrefetchScalarGridSpec(
            num_scalar_prefetch=0,
            # task blocks outer, batch blocks inner: the big W1 block keeps the
            # same block index across the inner sweep -> fetched from HBM once.
            grid=(n_t, n_b),
            in_specs=[
                pl.BlockSpec((b_blk, F), lambda ti, bi: (bi, 0)),          # x
                pl.BlockSpec((F, t_blk * H), lambda ti, bi: (0, ti)),      # W1 block
                pl.BlockSpec((1, t_blk * H), lambda ti, bi: (0, ti)),      # b1 row
                pl.BlockSpec((1, t_blk * H), lambda ti, bi: (0, ti)),      # w2 row
                pl.BlockSpec((1, t_blk), lambda ti, bi: (0, ti)),          # b2 row
            ],
            out_specs=pl.BlockSpec((b_blk, t_blk), lambda ti, bi: (bi, ti)),
        ),
        compiler_params=pltpu.CompilerParams(
            dimension_semantics=("parallel", "parallel"),   # v7x megacore axes
            vmem_limit_bytes=vmem_limit),
        cost_estimate=cost,
    )(x_c, w1_packed, b1_packed, w2_packed, b2_row)

    return out[:, :T] if T_pad != T else out


def reference(x, w1, b1, w2, b2):
    # pure-JAX f32 reference of the PyTorch forward
    h = jnp.maximum(jnp.einsum("bf,tfh->tbh", x, w1) + b1[:, None, :], 0.0)
    out = jnp.einsum("tbh,th->tb", h, w2) + b2[:, None]
    return out.T  # (B, T)


if __name__ == "__main__":
    # small, module-consistent shapes
    num_tasks = 4
    batch = 2
    in_features = 32
    num_hidden_nodes = 64

    key = jax.random.PRNGKey(0)
    kx, k1, k2, k3, k4 = jax.random.split(key, 5)

    # deterministic synthetic parameters (small-uniform Linear-style init)
    x = jax.random.normal(kx, (batch, in_features), dtype=jnp.float32)
    s1 = 1.0 / jnp.sqrt(in_features)
    s2 = 1.0 / jnp.sqrt(num_hidden_nodes)
    w1 = jax.random.uniform(k1, (num_tasks, in_features, num_hidden_nodes),
                            minval=-s1, maxval=s1, dtype=jnp.float32)
    b1 = jax.random.uniform(k2, (num_tasks, num_hidden_nodes),
                            minval=-s1, maxval=s1, dtype=jnp.float32)
    w2 = jax.random.uniform(k3, (num_tasks, num_hidden_nodes),
                            minval=-s2, maxval=s2, dtype=jnp.float32)
    b2 = jax.random.uniform(k4, (num_tasks,),
                            minval=-s2, maxval=s2, dtype=jnp.float32)

    out = jax.block_until_ready(task_specific_prediction(x, w1, b1, w2, b2))
    ref = reference(x, w1, b1, w2, b2)

    assert out.shape == (batch, num_tasks), out.shape
    # bf16 x/W1 streaming with f32 accumulation -> loosened tolerance vs f32 ref
    assert jnp.allclose(out, ref, atol=5e-2, rtol=5e-2), (out, ref)
    print("KERNEL_OK")
</pallas_src>

<mosaic_0001>
module attributes {stable_mosaic.version = 11 : i64} {
  func.func @_task_block_kernel(%arg0: i32, %arg1: i32, %arg2: memref<2x32xbf16, #tpu.memory_space<vmem>>, %arg3: memref<32x256xbf16, #tpu.memory_space<vmem>>, %arg4: memref<1x256xf32, #tpu.memory_space<vmem>>, %arg5: memref<1x256xf32, #tpu.memory_space<vmem>>, %arg6: memref<1x4xf32, #tpu.memory_space<vmem>>, %arg7: memref<2x4xf32, #tpu.memory_space<vmem>>) attributes {dimension_semantics = [#tpu.dimension_semantics<parallel>, #tpu.dimension_semantics<parallel>], iteration_bounds = array<i64: 1, 1>, scalar_prefetch = 0 : i64, scratch_operands = 0 : i64, tpu.core_type = #tpu.core_type<tc>, window_params = [{transform_indices = @transform_0, window_bounds = array<i64: 2, 32>}, {transform_indices = @transform_1, window_bounds = array<i64: 32, 256>}, {transform_indices = @transform_2, window_bounds = array<i64: 1, 256>}, {transform_indices = @transform_3, window_bounds = array<i64: 1, 256>}, {transform_indices = @transform_4, window_bounds = array<i64: 1, 4>}, {transform_indices = @transform_5, window_bounds = array<i64: 2, 4>}]} {
    %c0 = arith.constant 0 : index
    %c0_0 = arith.constant 0 : index
    %0 = vector.load %arg2[%c0, %c0_0] : memref<2x32xbf16, #tpu.memory_space<vmem>>, vector<2x32xbf16>
    %c0_1 = arith.constant 0 : index
    %c0_2 = arith.constant 0 : index
    %1 = vector.load %arg3[%c0_1, %c0_2] : memref<32x256xbf16, #tpu.memory_space<vmem>>, vector<32x256xbf16>
    %cst = arith.constant dense<0.000000e+00> : vector<2x256xf32>
    %2 = tpu.matmul %0, %1, %cst {dimension_numbers = #tpu.dot_dimension_numbers<[1], [0], [0], [1], [0, 0, 1, 1], [], []>} : vector<2x32xbf16>, vector<32x256xbf16>, vector<2x256xf32> -> vector<2x256xf32>
    %c0_3 = arith.constant 0 : index
    %c0_4 = arith.constant 0 : index
    %3 = vector.load %arg4[%c0_3, %c0_4] : memref<1x256xf32, #tpu.memory_space<vmem>>, vector<1x256xf32>
    %4 = vector.broadcast %3 : vector<1x256xf32> to vector<2x256xf32>
    %5 = arith.addf %2, %4 : vector<2x256xf32>
    %cst_5 = arith.constant 0.000000e+00 : f32
    %6 = vector.broadcast %cst_5 : f32 to vector<2x256xf32>
    %7 = arith.maximumf %5, %6 : vector<2x256xf32>
    %c0_6 = arith.constant 0 : index
    %c0_7 = arith.constant 0 : index
    %8 = vector.load %arg5[%c0_6, %c0_7] : memref<1x256xf32, #tpu.memory_space<vmem>>, vector<1x256xf32>
    %9 = vector.broadcast %8 : vector<1x256xf32> to vector<2x256xf32>
    %10 = arith.mulf %7, %9 : vector<2x256xf32>
    %11 = vector.extract_strided_slice %10 {offsets = [0, 0], sizes = [2, 4], strides = [1, 1]} : vector<2x256xf32> to vector<2x4xf32>
    %12 = vector.extract_strided_slice %10 {offsets = [0, 4], sizes = [2, 4], strides = [1, 1]} : vector<2x256xf32> to vector<2x4xf32>
    %13 = vector.extract_strided_slice %10 {offsets = [0, 8], sizes = [2, 4], strides = [1, 1]} : vector<2x256xf32> to vector<2x4xf32>
    %14 = vector.extract_strided_slice %10 {offsets = [0, 12], sizes = [2, 4], strides = [1, 1]} : vector<2x256xf32> to vector<2x4xf32>
    %15 = vector.extract_strided_slice %10 {offsets = [0, 16], sizes = [2, 4], strides = [1, 1]} : vector<2x256xf32> to vector<2x4xf32>
    %16 = vector.extract_strided_slice %10 {offsets = [0, 20], sizes = [2, 4], strides = [1, 1]} : vector<2x256xf32> to vector<2x4xf32>
    %17 = vector.extract_strided_slice %10 {offsets = [0, 24], sizes = [2, 4], strides = [1, 1]} : vector<2x256xf32> to vector<2x4xf32>
    %18 = vector.extract_strided_slice %10 {offsets = [0, 28], sizes = [2, 4], strides = [1, 1]} : vector<2x256xf32> to vector<2x4xf32>
    %19 = vector.extract_strided_slice %10 {offsets = [0, 32], sizes = [2, 4], strides = [1, 1]} : vector<2x256xf32> to vector<2x4xf32>
    %20 = vector.extract_strided_slice %10 {offsets = [0, 36], sizes = [2, 4], strides = [1, 1]} : vector<2x256xf32> to vector<2x4xf32>
    %21 = vector.extract_strided_slice %10 {offsets = [0, 40], sizes = [2, 4], strides = [1, 1]} : vector<2x256xf32> to vector<2x4xf32>
    %22 = vector.extract_strided_slice %10 {offsets = [0, 44], sizes = [2, 4], strides = [1, 1]} : vector<2x256xf32> to vector<2x4xf32>
    %23 = vector.extract_strided_slice %10 {offsets = [0, 48], sizes = [2, 4], strides = [1, 1]} : vector<2x256xf32> to vector<2x4xf32>
    %24 = vector.extract_strided_slice %10 {offsets = [0, 52], sizes = [2, 4], strides = [1, 1]} : vector<2x256xf32> to vector<2x4xf32>
    %25 = vector.extract_strided_slice %10 {offsets = [0, 56], sizes = [2, 4], strides = [1, 1]} : vector<2x256xf32> to vector<2x4xf32>
    %26 = vector.extract_strided_slice %10 {offsets = [0, 60], sizes = [2, 4], strides = [1, 1]} : vector<2x256xf32> to vector<2x4xf32>
    %27 = vector.extract_strided_slice %10 {offsets = [0, 64], sizes = [2, 4], strides = [1, 1]} : vector<2x256xf32> to vector<2x4xf32>
    %28 = vector.extract_strided_slice %10 {offsets = [0, 68], sizes = [2, 4], strides = [1, 1]} : vector<2x256xf32> to vector<2x4xf32>
    %29 = vector.extract_strided_slice %10 {offsets = [0, 72], sizes = [2, 4], strides = [1, 1]} : vector<2x256xf32> to vector<2x4xf32>
    %30 = vector.extract_strided_slice %10 {offsets = [0, 76], sizes = [2, 4], strides = [1, 1]} : vector<2x256xf32> to vector<2x4xf32>
    %31 = vector.extract_strided_slice %10 {offsets = [0, 80], sizes = [2, 4], strides = [1, 1]} : vector<2x256xf32> to vector<2x4xf32>
    %32 = vector.extract_strided_slice %10 {offsets = [0, 84], sizes = [2, 4], strides = [1, 1]} : vector<2x256xf32> to vector<2x4xf32>
    %33 = vector.extract_strided_slice %10 {offsets = [0, 88], sizes = [2, 4], strides = [1, 1]} : vector<2x256xf32> to vector<2x4xf32>
    %34 = vector.extract_strided_slice %10 {offsets = [0, 92], sizes = [2, 4], strides = [1, 1]} : vector<2x256xf32> to vector<2x4xf32>
    %35 = vector.extract_strided_slice %10 {offsets = [0, 96], sizes = [2, 4], strides = [1, 1]} : vector<2x256xf32> to vector<2x4xf32>
    %36 = vector.extract_strided_slice %10 {offsets = [0, 100], sizes = [2, 4], strides = [1, 1]} : vector<2x256xf32> to vector<2x4xf32>
    %37 = vector.extract_strided_slice %10 {offsets = [0, 104], sizes = [2, 4], strides = [1, 1]} : vector<2x256xf32> to vector<2x4xf32>
    %38 = vector.extract_strided_slice %10 {offsets = [0, 108], sizes = [2, 4], strides = [1, 1]} : vector<2x256xf32> to vector<2x4xf32>
    %39 = vector.extract_strided_slice %10 {offsets = [0, 112], sizes = [2, 4], strides = [1, 1]} : vector<2x256xf32> to vector<2x4xf32>
    %40 = vector.extract_strided_slice %10 {offsets = [0, 116], sizes = [2, 4], strides = [1, 1]} : vector<2x256xf32> to vector<2x4xf32>
    %41 = vector.extract_strided_slice %10 {offsets = [0, 120], sizes = [2, 4], strides = [1, 1]} : vector<2x256xf32> to vector<2x4xf32>
    %42 = vector.extract_strided_slice %10 {offsets = [0, 124], sizes = [2, 4], strides = [1, 1]} : vector<2x256xf32> to vector<2x4xf32>
    %43 = vector.extract_strided_slice %10 {offsets = [0, 128], sizes = [2, 4], strides = [1, 1]} : vector<2x256xf32> to vector<2x4xf32>
    %44 = vector.extract_strided_slice %10 {offsets = [0, 132], sizes = [2, 4], strides = [1, 1]} : vector<2x256xf32> to vector<2x4xf32>
    %45 = vector.extract_strided_slice %10 {offsets = [0, 136], sizes = [2, 4], strides = [1, 1]} : vector<2x256xf32> to vector<2x4xf32>
    %46 = vector.extract_strided_slice %10 {offsets = [0, 140], sizes = [2, 4], strides = [1, 1]} : vector<2x256xf32> to vector<2x4xf32>
    %47 = vector.extract_strided_slice %10 {offsets = [0, 144], sizes = [2, 4], strides = [1, 1]} : vector<2x256xf32> to vector<2x4xf32>
    %48 = vector.extract_strided_slice %10 {offsets = [0, 148], sizes = [2, 4], strides = [1, 1]} : vector<2x256xf32> to vector<2x4xf32>
    %49 = vector.extract_strided_slice %10 {offsets = [0, 152], sizes = [2, 4], strides = [1, 1]} : vector<2x256xf32> to vector<2x4xf32>
    %50 = vector.extract_strided_slice %10 {offsets = [0, 156], sizes = [2, 4], strides = [1, 1]} : vector<2x256xf32> to vector<2x4xf32>
    %51 = vector.extract_strided_slice %10 {offsets = [0, 160], sizes = [2, 4], strides = [1, 1]} : vector<2x256xf32> to vector<2x4xf32>
    %52 = vector.extract_strided_slice %10 {offsets = [0, 164], sizes = [2, 4], strides = [1, 1]} : vector<2x256xf32> to vector<2x4xf32>
    %53 = vector.extract_strided_slice %10 {offsets = [0, 168], sizes = [2, 4], strides = [1, 1]} : vector<2x256xf32> to vector<2x4xf32>
    %54 = vector.extract_strided_slice %10 {offsets = [0, 172], sizes = [2, 4], strides = [1, 1]} : vector<2x256xf32> to vector<2x4xf32>
    %55 = vector.extract_strided_slice %10 {offsets = [0, 176], sizes = [2, 4], strides = [1, 1]} : vector<2x256xf32> to vector<2x4xf32>
    %56 = vector.extract_strided_slice %10 {offsets = [0, 180], sizes = [2, 4], strides = [1, 1]} : vector<2x256xf32> to vector<2x4xf32>
    %57 = vector.extract_strided_slice %10 {offsets = [0, 184], sizes = [2, 4], strides = [1, 1]} : vector<2x256xf32> to vector<2x4xf32>
    %58 = vector.extract_strided_slice %10 {offsets = [0, 188], sizes = [2, 4], strides = [1, 1]} : vector<2x256xf32> to vector<2x4xf32>
    %59 = vector.extract_strided_slice %10 {offsets = [0, 192], sizes = [2, 4], strides = [1, 1]} : vector<2x256xf32> to vector<2x4xf32>
    %60 = vector.extract_strided_slice %10 {offsets = [0, 196], sizes = [2, 4], strides = [1, 1]} : vector<2x256xf32> to vector<2x4xf32>
    %61 = vector.extract_strided_slice %10 {offsets = [0, 200], sizes = [2, 4], strides = [1, 1]} : vector<2x256xf32> to vector<2x4xf32>
    %62 = vector.extract_strided_slice %10 {offsets = [0, 204], sizes = [2, 4], strides = [1, 1]} : vector<2x256xf32> to vector<2x4xf32>
    %63 = vector.extract_strided_slice %10 {offsets = [0, 208], sizes = [2, 4], strides = [1, 1]} : vector<2x256xf32> to vector<2x4xf32>
    %64 = vector.extract_strided_slice %10 {offsets = [0, 212], sizes = [2, 4], strides = [1, 1]} : vector<2x256xf32> to vector<2x4xf32>
    %65 = vector.extract_strided_slice %10 {offsets = [0, 216], sizes = [2, 4], strides = [1, 1]} : vector<2x256xf32> to vector<2x4xf32>
    %66 = vector.extract_strided_slice %10 {offsets = [0, 220], sizes = [2, 4], strides = [1, 1]} : vector<2x256xf32> to vector<2x4xf32>
    %67 = vector.extract_strided_slice %10 {offsets = [0, 224], sizes = [2, 4], strides = [1, 1]} : vector<2x256xf32> to vector<2x4xf32>
    %68 = vector.extract_strided_slice %10 {offsets = [0, 228], sizes = [2, 4], strides = [1, 1]} : vector<2x256xf32> to vector<2x4xf32>
    %69 = vector.extract_strided_slice %10 {offsets = [0, 232], sizes = [2, 4], strides = [1, 1]} : vector<2x256xf32> to vector<2x4xf32>
    %70 = vector.extract_strided_slice %10 {offsets = [0, 236], sizes = [2, 4], strides = [1, 1]} : vector<2x256xf32> to vector<2x4xf32>
    %71 = vector.extract_strided_slice %10 {offsets = [0, 240], sizes = [2, 4], strides = [1, 1]} : vector<2x256xf32> to vector<2x4xf32>
    %72 = vector.extract_strided_slice %10 {offsets = [0, 244], sizes = [2, 4], strides = [1, 1]} : vector<2x256xf32> to vector<2x4xf32>
    %73 = vector.extract_strided_slice %10 {offsets = [0, 248], sizes = [2, 4], strides = [1, 1]} : vector<2x256xf32> to vector<2x4xf32>
    %74 = vector.extract_strided_slice %10 {offsets = [0, 252], sizes = [2, 4], strides = [1, 1]} : vector<2x256xf32> to vector<2x4xf32>
    %75 = arith.addf %11, %12 : vector<2x4xf32>
    %76 = arith.addf %13, %14 : vector<2x4xf32>
    %77 = arith.addf %15, %16 : vector<2x4xf32>
    %78 = arith.addf %17, %18 : vector<2x4xf32>
    %79 = arith.addf %19, %20 : vector<2x4xf32>
    %80 = arith.addf %21, %22 : vector<2x4xf32>
    %81 = arith.addf %23, %24 : vector<2x4xf32>
    %82 = arith.addf %25, %26 : vector<2x4xf32>
    %83 = arith.addf %27, %28 : vector<2x4xf32>
    %84 = arith.addf %29, %30 : vector<2x4xf32>
    %85 = arith.addf %31, %32 : vector<2x4xf32>
    %86 = arith.addf %33, %34 : vector<2x4xf32>
    %87 = arith.addf %35, %36 : vector<2x4xf32>
    %88 = arith.addf %37, %38 : vector<2x4xf32>
    %89 = arith.addf %39, %40 : vector<2x4xf32>
    %90 = arith.addf %41, %42 : vector<2x4xf32>
    %91 = arith.addf %43, %44 : vector<2x4xf32>
    %92 = arith.addf %45, %46 : vector<2x4xf32>
    %93 = arith.addf %47, %48 : vector<2x4xf32>
    %94 = arith.addf %49, %50 : vector<2x4xf32>
    %95 = arith.addf %51, %52 : vector<2x4xf32>
    %96 = arith.addf %53, %54 : vector<2x4xf32>
    %97 = arith.addf %55, %56 : vector<2x4xf32>
    %98 = arith.addf %57, %58 : vector<2x4xf32>
    %99 = arith.addf %59, %60 : vector<2x4xf32>
    %100 = arith.addf %61, %62 : vector<2x4xf32>
    %101 = arith.addf %63, %64 : vector<2x4xf32>
    %102 = arith.addf %65, %66 : vector<2x4xf32>
    %103 = arith.addf %67, %68 : vector<2x4xf32>
    %104 = arith.addf %69, %70 : vector<2x4xf32>
    %105 = arith.addf %71, %72 : vector<2x4xf32>
    %106 = arith.addf %73, %74 : vector<2x4xf32>
    %107 = arith.addf %75, %76 : vector<2x4xf32>
    %108 = arith.addf %77, %78 : vector<2x4xf32>
    %109 = arith.addf %79, %80 : vector<2x4xf32>
    %110 = arith.addf %81, %82 : vector<2x4xf32>
    %111 = arith.addf %83, %84 : vector<2x4xf32>
    %112 = arith.addf %85, %86 : vector<2x4xf32>
    %113 = arith.addf %87, %88 : vector<2x4xf32>
    %114 = arith.addf %89, %90 : vector<2x4xf32>
    %115 = arith.addf %91, %92 : vector<2x4xf32>
    %116 = arith.addf %93, %94 : vector<2x4xf32>
    %117 = arith.addf %95, %96 : vector<2x4xf32>
    %118 = arith.addf %97, %98 : vector<2x4xf32>
    %119 = arith.addf %99, %100 : vector<2x4xf32>
    %120 = arith.addf %101, %102 : vector<2x4xf32>
    %121 = arith.addf %103, %104 : vector<2x4xf32>
    %122 = arith.addf %105, %106 : vector<2x4xf32>
    %123 = arith.addf %107, %108 : vector<2x4xf32>
    %124 = arith.addf %109, %110 : vector<2x4xf32>
    %125 = arith.addf %111, %112 : vector<2x4xf32>
    %126 = arith.addf %113, %114 : vector<2x4xf32>
    %127 = arith.addf %115, %116 : vector<2x4xf32>
    %128 = arith.addf %117, %118 : vector<2x4xf32>
    %129 = arith.addf %119, %120 : vector<2x4xf32>
    %130 = arith.addf %121, %122 : vector<2x4xf32>
    %131 = arith.addf %123, %124 : vector<2x4xf32>
    %132 = arith.addf %125, %126 : vector<2x4xf32>
    %133 = arith.addf %127, %128 : vector<2x4xf32>
    %134 = arith.addf %129, %130 : vector<2x4xf32>
    %135 = arith.addf %131, %132 : vector<2x4xf32>
    %136 = arith.addf %133, %134 : vector<2x4xf32>
    %137 = arith.addf %135, %136 : vector<2x4xf32>
    %c0_8 = arith.constant 0 : index
    %c0_9 = arith.constant 0 : index
    %138 = vector.load %arg6[%c0_8, %c0_9] : memref<1x4xf32, #tpu.memory_space<vmem>>, vector<1x4xf32>
    %139 = vector.broadcast %138 : vector<1x4xf32> to vector<2x4xf32>
    %140 = arith.addf %137, %139 : vector<2x4xf32>
    %c0_10 = arith.constant 0 : index
    %c0_11 = arith.constant 0 : index
    %141 = vector.load %arg7[%c0_10, %c0_11] : memref<2x4xf32, #tpu.memory_space<vmem>>, vector<2x4xf32>
    tpu.vector_store %arg7[%c0_10, %c0_11], %140 {strides = array<i32>} : memref<2x4xf32, #tpu.memory_space<vmem>>, vector<2x4xf32>,
    return
  }
  func.func @transform_0(%arg0: i32, %arg1: i32) -> (i32, i32) {
    %c0_i32 = arith.constant 0 : i32
    %c0_i32_0 = arith.constant 0 : i32
    return %arg1, %c0_i32 : i32, i32
  }
  func.func @transform_1(%arg0: i32, %arg1: i32) -> (i32, i32) {
    %c0_i32 = arith.constant 0 : i32
    %c0_i32_0 = arith.constant 0 : i32
    return %c0_i32, %arg0 : i32, i32
  }
  func.func @transform_2(%arg0: i32, %arg1: i32) -> (i32, i32) {
    %c0_i32 = arith.constant 0 : i32
    %c0_i32_0 = arith.constant 0 : i32
    return %c0_i32, %arg0 : i32, i32
  }
  func.func @transform_3(%arg0: i32, %arg1: i32) -> (i32, i32) {
    %c0_i32 = arith.constant 0 : i32
    %c0_i32_0 = arith.constant 0 : i32
    return %c0_i32, %arg0 : i32, i32
  }
  func.func @transform_4(%arg0: i32, %arg1: i32) -> (i32, i32) {
    %c0_i32 = arith.constant 0 : i32
    %c0_i32_0 = arith.constant 0 : i32
    return %c0_i32, %arg0 : i32, i32
  }
  func.func @transform_5(%arg0: i32, %arg1: i32) -> (i32, i32) {
    %c0_i32 = arith.constant 0 : i32
    return %arg1, %arg0 : i32, i32
  }
}

</mosaic_0001>

<llo_original>
// kernel: tpu_custom_call.1
$region0: #{tpu_custom_call.1}
  #allocation0 [shape = 'u32[]', space=smem, size = 0x4, offset = 0x4, fixed_abs, tag = 'smem constant byte address 0x4 - core index']
  #allocation1 [shape = 'u32[72,128]{1,0:T(1,128)}', space=vmem, size = 0x9000, scoped, tag = 'internal scratch']
  %s0 = inlined_call_operand.hbm [shape: bf16[2,32], index: 0, kind: input, shape index: {}]
  %s1 = inlined_call_operand.hbm [shape: bf16[32,256], index: 1, kind: input, shape index: {}]
  %s2 = inlined_call_operand.hbm [shape: f32[1,256], index: 2, kind: input, shape index: {}]
  %s3 = inlined_call_operand.vmem [shape: f32[1,256], index: 3, kind: input, shape index: {}]
  %s4 = inlined_call_operand.vmem [shape: f32[1,4], index: 4, kind: input, shape index: {}]
  %s5 = inlined_call_operand.hbm [shape: f32[2,4], index: 5, kind: output, shape index: {}]
  %s6 = sld [smem:[#allocation0]]
  $region42: #{tpu_custom_call.1} parent=0
    _
  %s8 = ssub.s32 1, %s6
  %s9 = scalar_select 0, %s8, %s6
  $region1: #{tpu_custom_call.1} parent=0
    #allocation2 [shape = 'u8[512]{0}', space=vmem, size = 0x400, scoped, tag = 'input window, operand 0, single buffered']
    #allocation3 [shape = 's32[1]{0}', space=sflag, size = 0x4, scoped, tag = 'scoped memory for tpu_custom_call.1']
    #allocation4 [shape = 's32[1]{0}', space=sflag, size = 0x4, scoped, tag = 'scoped memory for tpu_custom_call.1']
    #allocation5 [shape = 'u8[16384]{0}', space=vmem, size = 0x4000, scoped, tag = 'input window, operand 1, single buffered']
    #allocation6 [shape = 's32[1]{0}', space=sflag, size = 0x4, scoped, tag = 'scoped memory for tpu_custom_call.1']
    #allocation7 [shape = 'u8[1024]{0}', space=vmem, size = 0x400, scoped, tag = 'input window, operand 2, single buffered']
    #allocation8 [shape = 'u8[1024]{0}', space=vmem, size = 0x400, scoped, tag = 'output window, operand 0, single buffered']
    %10 = vsyncpa [#allocation3], 0
    %11 = vsyncpa [#allocation6], 0
    %12 = vsyncpa [#allocation4], 0
    // Predicated region
    $region2: #{tpu_custom_call.1} parent=1 // pred_check
      _
    $region3: #{tpu_custom_call.1} parent=1 // pred_check_branch
      %14 = sbr.rel (0) target = $region5
    $region4: #{tpu_custom_call.1} parent=1 // pred_region
      %16 = vsyncadd [#allocation3], 0
      %s18 = sshll.u32 %s0, 4
      %s19 = int_to_ptr.hbm [resolvable:$true] %s18
      %s20 = sshll.u32 [#allocation2], 4
      %s21 = int_to_ptr.vmem [resolvable:$true] %s20
      %23 = dma.hbm_to_vmem [thread:$0]  %s19, 16, %s21, [#allocation3]
    $region5: #{tpu_custom_call.1} parent=1 // pred_fallthru
      _
    // Predicated region
    $region6: #{tpu_custom_call.1} parent=1 // pred_check
      _
    $region7: #{tpu_custom_call.1} parent=1 // pred_check_branch
      %25 = sbr.rel (0) target = $region9
    $region8: #{tpu_custom_call.1} parent=1 // pred_region
      %27 = vsyncadd [#allocation6], 0
      %s28 = sshll.u32 %s1, 4
      %s29 = int_to_ptr.hbm [resolvable:$true] %s28
      %s30 = sshll.u32 [#allocation5], 4
      %s31 = int_to_ptr.vmem [resolvable:$true] %s30
      %36 = dma.hbm_to_vmem [thread:$0]  %s29, 512, %s31, [#allocation6], 128, 128, 8
    $region9: #{tpu_custom_call.1} parent=1 // pred_fallthru
      _
    // Predicated region
    $region10: #{tpu_custom_call.1} parent=1 // pred_check
      _
    $region11: #{tpu_custom_call.1} parent=1 // pred_check_branch
      %38 = sbr.rel (0) target = $region13
    $region12: #{tpu_custom_call.1} parent=1 // pred_region
      %40 = vsyncadd [#allocation6], 0
      %s42 = sshll.u32 %s2, 4
      %s43 = int_to_ptr.hbm [resolvable:$true] %s42
      %s44 = sshll.u32 [#allocation7], 4
      %s45 = int_to_ptr.vmem [resolvable:$true] %s44
      %47 = dma.hbm_to_vmem [thread:$0]  %s43, 32, %s45, [#allocation6]
    $region13: #{tpu_custom_call.1} parent=1 // pred_fallthru
      _
    // Predicated region
    $region14: #{tpu_custom_call.1} parent=1 // pred_check
      _
    $region15: #{tpu_custom_call.1} parent=1 // pred_check_branch
      %49 = sbr.rel (0) target = $region17
    $region16: #{tpu_custom_call.1} parent=1 // pred_region
      _
    $region17: #{tpu_custom_call.1} parent=1 // pred_fallthru
      _
    // Predicated region
    $region18: #{tpu_custom_call.1} parent=1 // pred_check
      _
    $region19: #{tpu_custom_call.1} parent=1 // pred_check_branch
      %51 = sbr.rel (0) target = $region21
    $region20: #{tpu_custom_call.1} parent=1 // pred_region
      _
    $region21: #{tpu_custom_call.1} parent=1 // pred_fallthru
      _
    // Predicated region
    $region22: #{tpu_custom_call.1} parent=1 // pred_check
      _
    $region23: #{tpu_custom_call.1} parent=1 // pred_check_branch
      %53 = sbr.rel (0) target = $region25
    $region24: #{tpu_custom_call.1} parent=1 // pred_region
      %55 = dma.done [#allocation3], 16
    $region25: #{tpu_custom_call.1} parent=1 // pred_fallthru
      _
    // Predicated region
    $region26: #{tpu_custom_call.1} parent=1 // pred_check
      _
    $region27: #{tpu_custom_call.1} parent=1 // pred_check_branch
      %57 = sbr.rel (0) target = $region29
    $region28: #{tpu_custom_call.1} parent=1 // pred_region
      %59 = dma.done [#allocation6], 512
    $region29: #{tpu_custom_call.1} parent=1 // pred_fallthru
      _
    // Predicated region
    $region30: #{tpu_custom_call.1} parent=1 // pred_check
      _
    $region31: #{tpu_custom_call.1} parent=1 // pred_check_branch
      %61 = sbr.rel (0) target = $region33
    $region32: #{tpu_custom_call.1} parent=1 // pred_region
      %63 = dma.done [#allocation6], 32
    $region33: #{tpu_custom_call.1} parent=1 // pred_fallthru
      _
    %v65 = vld [vmem:[#allocation2] sm:$0x1]
    %v66 = vld [vmem:[#allocation5] sm:$0xff]
    %v67 = vld [vmem:[#allocation5 + $0x8] sm:$0xff]
    %v68 = vld [vmem:[#allocation5 + $0x10] sm:$0xff]
    %v69 = vld [vmem:[#allocation5 + $0x18] sm:$0xff]
    %v70 = vld [vmem:[#allocation7] sm:$0x3]
    %v72 = vperm.slane %v70, 0
    %v73 = vperm.slane %v70, 1
    %v80 = vunpack.c.l.b16 %v66
    %v81 = vunpack.c.h.b16 %v66
    %v82 = vunpack.c.l.b16 %v67
    %v83 = vunpack.c.h.b16 %v67
    %v84 = vunpack.c.l.b16 %v68
    %v85 = vunpack.c.h.b16 %v68
    %v86 = vunpack.c.l.b16 %v69
    %v87 = vunpack.c.h.b16 %v69
    %v88 = vpack.c.b16 %v82, %v80
    %v89 = vpack.c.b16 %v83, %v81
    %v90 = vpack.c.b16 %v86, %v84
    %v91 = vpack.c.b16 %v87, %v85
    %vm96 = vcmask 261120
    %v98 = vsel %vm96, %v65, 0
    %100 = vmatpush.bf16.msra.mxu0 0
    %101 = vmatpush.bf16.msra.mxu0 0
    %102 = vmatpush.bf16.msra.mxu0 0
    %103 = vmatpush.bf16.msra.mxu0 0
    %104 = vmatpush.bf16.msra.mxu0 0
    %105 = vmatpush.bf16.msra.mxu0 0
    %106 = vmatpush.bf16.msra.mxu0 %v90
    %107 = vmatpush.bf16.msra.mxu0 %v88
    %108 = vmatmul.bf16.gmra.mxu0 %v98
    %v109 = vpop.f32.mrf.mxu0
    %v110 = vadd.f32 %v72, %v109
    %v111 = vpop.f32.mrf.mxu0
    %112 = vdwg.mxu0
    %113 = vmatpush.bf16.msra.mxu0 0
    %114 = vmatpush.bf16.msra.mxu0 0
    %115 = vmatpush.bf16.msra.mxu0 0
    %116 = vmatpush.bf16.msra.mxu0 0
    %117 = vmatpush.bf16.msra.mxu0 0
    %118 = vmatpush.bf16.msra.mxu0 0
    %119 = vmatpush.bf16.msra.mxu0 %v91
    %120 = vmatpush.bf16.msra.mxu0 %v89
    %121 = vmatmul.bf16.gmra.mxu0 %v98
    %v122 = vpop.f32.mrf.mxu0
    %v123 = vadd.f32 %v73, %v122
    %v124 = vpop.f32.mrf.mxu0
    %125 = vdwg.mxu0
    %v126 = vmax.f32 %v110, 0.0
    %v127 = vmax.f32 %v123, 0.0
    %v128 = vld [vmem:[%s3] sm:$0x3]
    %v130 = vperm.slane %v128, 0
    %v131 = vperm.slane %v128, 1
    %v134 = vmul.f32 %v126, %v130
    %v135 = vmul.f32 %v127, %v131
    %137 = vrot.lane.b32.xlu0 %v134, 124
    %v138 = vpop.permute.xlu0 %137
    %v140 = vadd.f32 %v134, %v138
    %142 = vrot.lane.b32.xlu0 %v135, 124
    %v143 = vpop.permute.xlu0 %142
    %v145 = vadd.f32 %v135, %v143
    %147 = vrot.lane.b32.xlu0 %v140, 120
    %v148 = vpop.permute.xlu0 %147
    %v150 = vadd.f32 %v140, %v148
    %152 = vrot.lane.b32.xlu0 %v145, 120
    %v153 = vpop.permute.xlu0 %152
    %v155 = vadd.f32 %v145, %v153
    %157 = vrot.lane.b32.xlu0 %v150, 112
    %v158 = vpop.permute.xlu0 %157
    %v160 = vadd.f32 %v150, %v158
    %162 = vrot.lane.b32.xlu0 %v155, 112
    %v163 = vpop.permute.xlu0 %162
    %v165 = vadd.f32 %v155, %v163
    %167 = vrot.lane.b32.xlu0 %v160, 96
    %v168 = vpop.permute.xlu0 %167
    %v170 = vadd.f32 %v160, %v168
    %172 = vrot.lane.b32.xlu0 %v165, 96
    %v173 = vpop.permute.xlu0 %172
    %v175 = vadd.f32 %v165, %v173
    %177 = vrot.lane.b32.xlu0 %v170, 64
    %v178 = vpop.permute.xlu0 %177
    %v180 = vadd.f32 %v170, %v178
    %182 = vrot.lane.b32.xlu0 %v175, 64
    %v183 = vpop.permute.xlu0 %182
    %v185 = vadd.f32 %v175, %v183
    %v186 = vadd.f32 %v180, %v185
    %v187 = vld [vmem:[%s4] sm:$0x1]
    %v189 = vperm.slane %v187, 0
    %v191 = vadd.f32 %v186, %v189
    %vm192 = vcmask 25600
    %193 = vst.msk [vmem:[#allocation8] sm:$0x3] %vm192, %v191
    // Predicated region
    $region34: #{tpu_custom_call.1} parent=1 // pred_check
      _
    $region35: #{tpu_custom_call.1} parent=1 // pred_check_branch
      %195 = sbr.rel (0) target = $region37
    $region36: #{tpu_custom_call.1} parent=1 // pred_region
      %197 = vsyncadd [#allocation4], 0
      %s199 = sshll.u32 [#allocation8], 4
      %s200 = int_to_ptr.vmem [resolvable:$true] %s199
      %s201 = sshll.u32 %s5, 4
      %s202 = int_to_ptr.hbm [resolvable:$true] %s201
      %204 = dma.vmem_to_hbm [thread:$0]  %s200, 32, %s202, [#allocation4]
    $region37: #{tpu_custom_call.1} parent=1 // pred_fallthru
      _
    // Predicated region
    $region38: #{tpu_custom_call.1} parent=1 // pred_check
      _
    $region39: #{tpu_custom_call.1} parent=1 // pred_check_branch
      %206 = sbr.rel (0) target = $region41
    $region40: #{tpu_custom_call.1} parent=1 // pred_region
      %208 = dma.done [#allocation4], 32
    $region41: #{tpu_custom_call.1} parent=1 // pred_fallthru
      _
    %209 = vsyncpa [#allocation3], 1
    %210 = vsyncpa [#allocation6], 1
    %211 = vsyncpa [#allocation4], 1

</llo_original>
